<compile_context>
chip_gen: v5e
topology: v5e:2x2
jax: 0.10.0
libtpu: 0.0.40
codegen_flags: <defaults>
</compile_context>

<pallas_src>
import functools

import jax
import jax.numpy as jnp
from jax.experimental import pallas as pl
from jax.experimental.pallas import tpu as pltpu


# ----------------------------------------------------------------------------
# Pallas kernel: one invocation computes all samples / all heads, then routes.
# ----------------------------------------------------------------------------
def _multitask_kernel(tid_ref, x_ref, w1_ref, b1_ref, w2_ref, b2_ref, out_ref,
                      *, num_tasks, hidden):
    # tid_ref: (B, 1) int32        x_ref : (B, D)
    # w1_ref : (D, T*H)            b1_ref: (1, T*H)
    # w2_ref : (T, H, O)           b2_ref: (T, 1, O)
    # out_ref: (B, O)
    x = x_ref[...]                                                  # (B, D)

    # Layer 1 for ALL heads at once: (B, D) @ (D, T*H) on the MXU.
    h = jnp.dot(x, w1_ref[...], preferred_element_type=jnp.float32) + b1_ref[...]
    h = jnp.maximum(h, 0.0)                                         # ReLU (Dropout = identity in eval)

    tids = tid_ref[...]                                             # (B, 1) int32
    acc = jnp.zeros(out_ref.shape, jnp.float32)                     # (B, O)

    # Layer 2: small static loop over heads; one-hot routing per sample.
    for t in range(num_tasks):
        mask = (tids == t).astype(jnp.float32)                      # (B, 1)
        h_t = h[:, t * hidden:(t + 1) * hidden]                     # (B, H)
        o_t = jnp.dot(h_t, w2_ref[t], preferred_element_type=jnp.float32) + b2_ref[t]
        acc = acc + mask * o_t

    out_ref[...] = acc.astype(out_ref.dtype)                        # single lane-contiguous store


def multi_task_decoder_pallas(x, task_ids, w1, b1, w2, b2):
    """x: [B, D] f32, task_ids: [B] int32.
    w1: [T, D, H], b1: [T, H], w2: [T, H, O_max], b2: [T, O_max].
    Returns padded outputs [B, O_max] (regression heads only use column 0)."""
    B, D = x.shape
    T, _, H = w1.shape
    O = w2.shape[-1]

    # Pack all heads' first-layer weights along lanes: [T, D, H] -> [D, T*H].
    w1_flat = jnp.transpose(w1, (1, 0, 2)).reshape(D, T * H)
    b1_flat = b1.reshape(1, T * H)
    b2r = b2.reshape(T, 1, O)
    tids = task_ids.astype(jnp.int32).reshape(B, 1)

    kernel = functools.partial(_multitask_kernel, num_tasks=T, hidden=H)
    vmem = pl.BlockSpec(memory_space=pltpu.MemorySpace.VMEM)

    out = pl.pallas_call(
        kernel,
        out_shape=jax.ShapeDtypeStruct((B, O), jnp.float32),
        in_specs=[vmem] * 6,      # everything is tiny; whole arrays resident in VMEM, no grid
        out_specs=vmem,
    )(tids, x, w1_flat, b1_flat, w2, b2r)
    return out


# ----------------------------------------------------------------------------
# Parameter construction (deterministic, mirrors TaskHead.__init__ shapes)
# ----------------------------------------------------------------------------
def make_params(key, input_dim, task_types):
    hidden = input_dim // 2
    n_out = [2 if t == "classification" else 1 for t in task_types]
    o_max = max(n_out)
    T = len(task_types)
    w1s, b1s, w2s, b2s = [], [], [], []
    for t in range(T):
        key, k1, k2, k3, k4 = jax.random.split(key, 5)
        # Linear(input_dim, hidden)
        w1 = jax.random.normal(k1, (input_dim, hidden), jnp.float32) * 0.1
        b1 = jax.random.normal(k2, (hidden,), jnp.float32) * 0.1
        # Linear(hidden, n_out[t]) padded to o_max with zeros
        w2 = jnp.zeros((hidden, o_max), jnp.float32)
        w2 = w2.at[:, : n_out[t]].set(
            jax.random.normal(k3, (hidden, n_out[t]), jnp.float32) * 0.1)
        b2 = jnp.zeros((o_max,), jnp.float32)
        b2 = b2.at[: n_out[t]].set(
            jax.random.normal(k4, (n_out[t],), jnp.float32) * 0.1)
        w1s.append(w1); b1s.append(b1); w2s.append(w2); b2s.append(b2)
    return (jnp.stack(w1s), jnp.stack(b1s), jnp.stack(w2s), jnp.stack(b2s)), n_out


def reference_forward(x, task_ids, w1, b1, w2, b2, n_out):
    """Pure-JAX reference reproducing the PyTorch per-sample loop."""
    outs = []
    for i in range(x.shape[0]):
        t = int(task_ids[i])
        h = jnp.maximum(x[i : i + 1] @ w1[t] + b1[t], 0.0)
        o = h @ w2[t] + b2[t]
        outs.append(o[:, : n_out[t]])
    return outs


if __name__ == "__main__":
    B, D = 8, 32                      # batch of graph embeddings, input_dim=32
    task_types = ["classification", "regression", "classification"]
    T = len(task_types)

    key = jax.random.PRNGKey(0)
    kx, kp = jax.random.split(key)
    x = jax.random.normal(kx, (B, D), jnp.float32)
    task_ids = jnp.array([0, 1, 2, 0, 1, 2, 0, 1], jnp.int32)

    (w1, b1, w2, b2), n_out = make_params(kp, D, task_types)

    padded = multi_task_decoder_pallas(x, task_ids, w1, b1, w2, b2)
    padded = jax.block_until_ready(padded)

    # Slice the padded kernel output into the PyTorch-style list of per-sample tensors.
    outputs = [padded[i : i + 1, : n_out[int(task_ids[i])]] for i in range(B)]

    ref = reference_forward(x, task_ids, w1, b1, w2, b2, n_out)
    for o, r in zip(outputs, ref):
        assert o.shape == r.shape
        assert jnp.allclose(o, r, atol=1e-3, rtol=1e-3), (o, r)

    print("KERNEL_OK")
</pallas_src>

<mosaic_0001>
module attributes {stable_mosaic.version = 11 : i64} {
  func.func @_multitask_kernel(%arg0: memref<8x1xi32, #tpu.memory_space<vmem>>, %arg1: memref<8x32xf32, #tpu.memory_space<vmem>>, %arg2: memref<32x48xf32, #tpu.memory_space<vmem>>, %arg3: memref<1x48xf32, #tpu.memory_space<vmem>>, %arg4: memref<3x16x2xf32, #tpu.memory_space<vmem>>, %arg5: memref<3x1x2xf32, #tpu.memory_space<vmem>>, %arg6: memref<8x2xf32, #tpu.memory_space<vmem>>) attributes {dimension_semantics = [], scalar_prefetch = 0 : i64, scratch_operands = 0 : i64, tpu.core_type = #tpu.core_type<tc>} {
    %c0 = arith.constant 0 : index
    %c0_0 = arith.constant 0 : index
    %0 = vector.load %arg1[%c0, %c0_0] : memref<8x32xf32, #tpu.memory_space<vmem>>, vector<8x32xf32>
    %c0_1 = arith.constant 0 : index
    %c0_2 = arith.constant 0 : index
    %1 = vector.load %arg2[%c0_1, %c0_2] : memref<32x48xf32, #tpu.memory_space<vmem>>, vector<32x48xf32>
    %cst = arith.constant dense<0.000000e+00> : vector<8x48xf32>
    %2 = tpu.matmul %0, %1, %cst {dimension_numbers = #tpu.dot_dimension_numbers<[1], [0], [0], [1], [0, 0, 1, 1], [], []>} : vector<8x32xf32>, vector<32x48xf32>, vector<8x48xf32> -> vector<8x48xf32>
    %c0_3 = arith.constant 0 : index
    %c0_4 = arith.constant 0 : index
    %3 = vector.load %arg3[%c0_3, %c0_4] : memref<1x48xf32, #tpu.memory_space<vmem>>, vector<1x48xf32>
    %4 = vector.broadcast %3 : vector<1x48xf32> to vector<8x48xf32>
    %5 = arith.addf %2, %4 : vector<8x48xf32>
    %cst_5 = arith.constant 0.000000e+00 : f32
    %6 = vector.broadcast %cst_5 : f32 to vector<8x48xf32>
    %7 = arith.maximumf %5, %6 : vector<8x48xf32>
    %c0_6 = arith.constant 0 : index
    %c0_7 = arith.constant 0 : index
    %8 = vector.load %arg0[%c0_6, %c0_7] : memref<8x1xi32, #tpu.memory_space<vmem>>, vector<8x1xi32>
    %cst_8 = arith.constant 0.000000e+00 : f32
    %9 = vector.broadcast %cst_8 : f32 to vector<8x2xf32>
    %c0_i32 = arith.constant 0 : i32
    %10 = vector.broadcast %c0_i32 : i32 to vector<8x1xi32>
    %11 = arith.cmpi eq, %8, %10 : vector<8x1xi32>
    %12 = arith.extui %11 : vector<8x1xi1> to vector<8x1xi32>
    %13 = arith.sitofp %12 : vector<8x1xi32> to vector<8x1xf32>
    %14 = vector.extract_strided_slice %7 {offsets = [0, 0], sizes = [8, 16], strides = [1, 1]} : vector<8x48xf32> to vector<8x16xf32>
    %c0_9 = arith.constant 0 : index
    %c0_10 = arith.constant 0 : index
    %c0_11 = arith.constant 0 : index
    %15 = vector.load %arg4[%c0_9, %c0_10, %c0_11] : memref<3x16x2xf32, #tpu.memory_space<vmem>>, vector<1x16x2xf32>
    %16 = vector.shape_cast %15 : vector<1x16x2xf32> to vector<16x2xf32>
    %cst_12 = arith.constant dense<0.000000e+00> : vector<8x2xf32>
    %17 = tpu.matmul %14, %16, %cst_12 {dimension_numbers = #tpu.dot_dimension_numbers<[1], [0], [0], [1], [0, 0, 1, 1], [], []>} : vector<8x16xf32>, vector<16x2xf32>, vector<8x2xf32> -> vector<8x2xf32>
    %c0_13 = arith.constant 0 : index
    %c0_14 = arith.constant 0 : index
    %c0_15 = arith.constant 0 : index
    %18 = vector.load %arg5[%c0_13, %c0_14, %c0_15] : memref<3x1x2xf32, #tpu.memory_space<vmem>>, vector<1x1x2xf32>
    %19 = vector.shape_cast %18 : vector<1x1x2xf32> to vector<1x2xf32>
    %20 = vector.broadcast %19 : vector<1x2xf32> to vector<8x2xf32>
    %21 = arith.addf %17, %20 : vector<8x2xf32>
    %22 = vector.broadcast %13 : vector<8x1xf32> to vector<8x2xf32>
    %23 = arith.mulf %22, %21 : vector<8x2xf32>
    %24 = arith.addf %9, %23 : vector<8x2xf32>
    %c1_i32 = arith.constant 1 : i32
    %25 = vector.broadcast %c1_i32 : i32 to vector<8x1xi32>
    %26 = arith.cmpi eq, %8, %25 : vector<8x1xi32>
    %27 = arith.extui %26 : vector<8x1xi1> to vector<8x1xi32>
    %28 = arith.sitofp %27 : vector<8x1xi32> to vector<8x1xf32>
    %29 = vector.extract_strided_slice %7 {offsets = [0, 16], sizes = [8, 16], strides = [1, 1]} : vector<8x48xf32> to vector<8x16xf32>
    %c1 = arith.constant 1 : index
    %c0_16 = arith.constant 0 : index
    %c0_17 = arith.constant 0 : index
    %30 = vector.load %arg4[%c1, %c0_16, %c0_17] : memref<3x16x2xf32, #tpu.memory_space<vmem>>, vector<1x16x2xf32>
    %31 = vector.shape_cast %30 : vector<1x16x2xf32> to vector<16x2xf32>
    %cst_18 = arith.constant dense<0.000000e+00> : vector<8x2xf32>
    %32 = tpu.matmul %29, %31, %cst_18 {dimension_numbers = #tpu.dot_dimension_numbers<[1], [0], [0], [1], [0, 0, 1, 1], [], []>} : vector<8x16xf32>, vector<16x2xf32>, vector<8x2xf32> -> vector<8x2xf32>
    %c1_19 = arith.constant 1 : index
    %c0_20 = arith.constant 0 : index
    %c0_21 = arith.constant 0 : index
    %33 = vector.load %arg5[%c1_19, %c0_20, %c0_21] : memref<3x1x2xf32, #tpu.memory_space<vmem>>, vector<1x1x2xf32>
    %34 = vector.shape_cast %33 : vector<1x1x2xf32> to vector<1x2xf32>
    %35 = vector.broadcast %34 : vector<1x2xf32> to vector<8x2xf32>
    %36 = arith.addf %32, %35 : vector<8x2xf32>
    %37 = vector.broadcast %28 : vector<8x1xf32> to vector<8x2xf32>
    %38 = arith.mulf %37, %36 : vector<8x2xf32>
    %39 = arith.addf %24, %38 : vector<8x2xf32>
    %c2_i32 = arith.constant 2 : i32
    %40 = vector.broadcast %c2_i32 : i32 to vector<8x1xi32>
    %41 = arith.cmpi eq, %8, %40 : vector<8x1xi32>
    %42 = arith.extui %41 : vector<8x1xi1> to vector<8x1xi32>
    %43 = arith.sitofp %42 : vector<8x1xi32> to vector<8x1xf32>
    %44 = vector.extract_strided_slice %7 {offsets = [0, 32], sizes = [8, 16], strides = [1, 1]} : vector<8x48xf32> to vector<8x16xf32>
    %c2 = arith.constant 2 : index
    %c0_22 = arith.constant 0 : index
    %c0_23 = arith.constant 0 : index
    %45 = vector.load %arg4[%c2, %c0_22, %c0_23] : memref<3x16x2xf32, #tpu.memory_space<vmem>>, vector<1x16x2xf32>
    %46 = vector.shape_cast %45 : vector<1x16x2xf32> to vector<16x2xf32>
    %cst_24 = arith.constant dense<0.000000e+00> : vector<8x2xf32>
    %47 = tpu.matmul %44, %46, %cst_24 {dimension_numbers = #tpu.dot_dimension_numbers<[1], [0], [0], [1], [0, 0, 1, 1], [], []>} : vector<8x16xf32>, vector<16x2xf32>, vector<8x2xf32> -> vector<8x2xf32>
    %c2_25 = arith.constant 2 : index
    %c0_26 = arith.constant 0 : index
    %c0_27 = arith.constant 0 : index
    %48 = vector.load %arg5[%c2_25, %c0_26, %c0_27] : memref<3x1x2xf32, #tpu.memory_space<vmem>>, vector<1x1x2xf32>
    %49 = vector.shape_cast %48 : vector<1x1x2xf32> to vector<1x2xf32>
    %50 = vector.broadcast %49 : vector<1x2xf32> to vector<8x2xf32>
    %51 = arith.addf %47, %50 : vector<8x2xf32>
    %52 = vector.broadcast %43 : vector<8x1xf32> to vector<8x2xf32>
    %53 = arith.mulf %52, %51 : vector<8x2xf32>
    %54 = arith.addf %39, %53 : vector<8x2xf32>
    %c0_28 = arith.constant 0 : index
    %c0_29 = arith.constant 0 : index
    %55 = vector.load %arg6[%c0_28, %c0_29] : memref<8x2xf32, #tpu.memory_space<vmem>>, vector<8x2xf32>
    tpu.vector_store %arg6[%c0_28, %c0_29], %54 {strides = array<i32>} : memref<8x2xf32, #tpu.memory_space<vmem>>, vector<8x2xf32>,
    return
  }
}

</mosaic_0001>

<llo_original>
// kernel: tpu_custom_call.1
$region0: #{tpu_custom_call.1}
  #allocation0 [shape = 'u32[]', space=smem, size = 0x4, offset = 0x4, fixed_abs, tag = 'smem constant byte address 0x4 - core index']
  #allocation1 [shape = 'u32[72,128]{1,0:T(1,128)}', space=vmem, size = 0x9000, scoped, tag = 'internal scratch']
  %s0 = inlined_call_operand.vmem [shape: s32[8,1], index: 0, kind: input, shape index: {}]
  %s1 = inlined_call_operand.vmem [shape: f32[8,32], index: 1, kind: input, shape index: {}]
  %s2 = inlined_call_operand.vmem [shape: f32[32,48], index: 2, kind: input, shape index: {}]
  %s3 = inlined_call_operand.vmem [shape: f32[1,48], index: 3, kind: input, shape index: {}]
  %s4 = inlined_call_operand.vmem [shape: f32[3,16,2], index: 4, kind: input, shape index: {}]
  %s5 = inlined_call_operand.vmem [shape: f32[3,1,2], index: 5, kind: input, shape index: {}]
  %s6 = inlined_call_operand.vmem [shape: f32[8,2], index: 6, kind: output, shape index: {}]
  %s7 = sld [smem:[#allocation0]]
  $region34: #{tpu_custom_call.1} parent=0
    _
  %s9 = ssub.s32 1, %s7
  %s10 = scalar_select 0, %s9, %s7
  // Predicated region
  $region2: #{tpu_custom_call.1} parent=0 // pred_check
    _
  $region3: #{tpu_custom_call.1} parent=0 // pred_check_branch
    %12 = sbr.rel (0) target = $region5
  $region4: #{tpu_custom_call.1} parent=0 // pred_region
    _
  $region5: #{tpu_custom_call.1} parent=0 // pred_fallthru
    _
  // Predicated region
  $region6: #{tpu_custom_call.1} parent=0 // pred_check
    _
  $region7: #{tpu_custom_call.1} parent=0 // pred_check_branch
    %14 = sbr.rel (0) target = $region9
  $region8: #{tpu_custom_call.1} parent=0 // pred_region
    _
  $region9: #{tpu_custom_call.1} parent=0 // pred_fallthru
    _
  // Predicated region
  $region10: #{tpu_custom_call.1} parent=0 // pred_check
    _
  $region11: #{tpu_custom_call.1} parent=0 // pred_check_branch
    %16 = sbr.rel (0) target = $region13
  $region12: #{tpu_custom_call.1} parent=0 // pred_region
    _
  $region13: #{tpu_custom_call.1} parent=0 // pred_fallthru
    _
  // Predicated region
  $region14: #{tpu_custom_call.1} parent=0 // pred_check
    _
  $region15: #{tpu_custom_call.1} parent=0 // pred_check_branch
    %18 = sbr.rel (0) target = $region17
  $region16: #{tpu_custom_call.1} parent=0 // pred_region
    _
  $region17: #{tpu_custom_call.1} parent=0 // pred_fallthru
    _
  // Predicated region
  $region18: #{tpu_custom_call.1} parent=0 // pred_check
    _
  $region19: #{tpu_custom_call.1} parent=0 // pred_check_branch
    %20 = sbr.rel (0) target = $region21
  $region20: #{tpu_custom_call.1} parent=0 // pred_region
    _
  $region21: #{tpu_custom_call.1} parent=0 // pred_fallthru
    _
  // Predicated region
  $region22: #{tpu_custom_call.1} parent=0 // pred_check
    _
  $region23: #{tpu_custom_call.1} parent=0 // pred_check_branch
    %22 = sbr.rel (0) target = $region25
  $region24: #{tpu_custom_call.1} parent=0 // pred_region
    _
  $region25: #{tpu_custom_call.1} parent=0 // pred_fallthru
    _
  %v23 = vld [vmem:[%s1] sm:$0xff]
  %v24 = vld [vmem:[%s2] sm:$0xff]
  %v25 = vld [vmem:[%s2 + $0x8] sm:$0xff]
  %v26 = vld [vmem:[%s2 + $0x10] sm:$0xff]
  %v27 = vld [vmem:[%s2 + $0x18] sm:$0xff]
  %v28 = vld [vmem:[%s3] sm:$0x1]
  %v30 = vperm.slane %v28, 0
  %vm32 = vcmask 261120
  %v34 = vsel %vm32, %v23, 0
  %36 = vmatpush.msra.mxu0 0.0
  %37 = vmatpush.msra.mxu0 0.0
  %38 = vmatpush.msra.mxu0 0.0
  %39 = vmatpush.msra.mxu0 0.0
  %40 = vmatpush.msra.mxu0 0.0
  %41 = vmatpush.msra.mxu0 0.0
  %42 = vmatpush.msra.mxu0 0.0
  %43 = vmatpush.msra.mxu0 0.0
  %44 = vmatpush.msra.mxu0 0.0
  %45 = vmatpush.msra.mxu0 0.0
  %46 = vmatpush.msra.mxu0 0.0
  %47 = vmatpush.msra.mxu0 0.0
  %48 = vmatpush.msra.mxu0 %v27
  %49 = vmatpush.msra.mxu0 %v26
  %50 = vmatpush.msra.mxu0 %v25
  %51 = vmatpush.msra.mxu0 %v24
  %52 = vmatmul.f32.gmra.mxu0 %v34
  %v53 = vpop.f32.mrf.mxu0
  %v54 = vadd.f32 %v30, %v53
  %55 = vdwg.mxu0
  %v56 = vmax.f32 %v54, 0.0
  %v57 = vld [vmem:[%s0] sm:$0xff]
  %vm58 = vcmp.eq.s32.totalorder %v57, 0
  %v59 = vsel %vm58, 1, 0
  %v60 = vcvt.s32.f32 %v59
  %v61 = vld [vmem:[%s4] sm:$0xff]
  %v62 = vld [vmem:[%s4 + $0x8] sm:$0xff]
  %v63 = vld [vmem:[%s5] sm:$0x1]
  %v65 = vperm.slane %v63, 0
  %vm67 = vcmask 130048
  %v69 = vsel %vm67, %v56, 0
  %71 = vmatpush.msra.mxu0 0.0
  %72 = vmatpush.msra.mxu0 0.0
  %73 = vmatpush.msra.mxu0 0.0
  %74 = vmatpush.msra.mxu0 0.0
  %75 = vmatpush.msra.mxu0 0.0
  %76 = vmatpush.msra.mxu0 0.0
  %77 = vmatpush.msra.mxu0 0.0
  %78 = vmatpush.msra.mxu0 0.0
  %79 = vmatpush.msra.mxu0 0.0
  %80 = vmatpush.msra.mxu0 0.0
  %81 = vmatpush.msra.mxu0 0.0
  %82 = vmatpush.msra.mxu0 0.0
  %83 = vmatpush.msra.mxu0 0.0
  %84 = vmatpush.msra.mxu0 0.0
  %85 = vmatpush.msra.mxu0 %v62
  %86 = vmatpush.msra.mxu0 %v61
  %87 = vmatmul.f32.gmra.mxu0 %v69
  %v88 = vpop.f32.mrf.mxu0
  %v89 = vadd.f32 %v65, %v88
  %90 = vdwg.mxu0
  %92 = vset.pattern.permute.xlu0 0
  %93 = vperm.xlu0 %92, %v60
  %v94 = vpop.permute.xlu0 %93
  %v96 = vmul.f32 %v94, %v89
  %v97 = vadd.f32 %v96, 0.0
  %vm98 = vcmp.eq.s32.totalorder %v57, 1
  %v99 = vsel %vm98, 1, 0
  %v100 = vcvt.s32.f32 %v99
  %s101 = scalar_lea.vmem %s4, 16
  %v102 = vld [vmem:[%s101] sm:$0xff]
  %v103 = vld [vmem:[%s101 + $0x8] sm:$0xff]
  %s104 = scalar_lea.vmem %s5, 1
  %v105 = vld [vmem:[%s104] sm:$0x1]
  %v107 = vperm.slane %v105, 0
  %109 = vrot.lane.b32.xlu0 %v56, 112
  %v110 = vpop.permute.xlu0 %109
  %v111 = vsel %vm67, %v110, 0
  %113 = vmatpush.msra.mxu0 0.0
  %114 = vmatpush.msra.mxu0 0.0
  %115 = vmatpush.msra.mxu0 0.0
  %116 = vmatpush.msra.mxu0 0.0
  %117 = vmatpush.msra.mxu0 0.0
  %118 = vmatpush.msra.mxu0 0.0
  %119 = vmatpush.msra.mxu0 0.0
  %120 = vmatpush.msra.mxu0 0.0
  %121 = vmatpush.msra.mxu0 0.0
  %122 = vmatpush.msra.mxu0 0.0
  %123 = vmatpush.msra.mxu0 0.0
  %124 = vmatpush.msra.mxu0 0.0
  %125 = vmatpush.msra.mxu0 0.0
  %126 = vmatpush.msra.mxu0 0.0
  %127 = vmatpush.msra.mxu0 %v103
  %128 = vmatpush.msra.mxu0 %v102
  %129 = vmatmul.f32.gmra.mxu0 %v111
  %v130 = vpop.f32.mrf.mxu0
  %v131 = vadd.f32 %v107, %v130
  %132 = vdwg.mxu0
  %134 = vset.pattern.permute.xlu0 0
  %135 = vperm.xlu0 %134, %v100
  %v136 = vpop.permute.xlu0 %135
  %v138 = vmul.f32 %v136, %v131
  %v139 = vadd.f32 %v97, %v138
  %vm140 = vcmp.eq.s32.totalorder %v57, 2
  %v141 = vsel %vm140, 1, 0
  %v142 = vcvt.s32.f32 %v141
  %s143 = scalar_lea.vmem %s4, 32
  %v144 = vld [vmem:[%s143] sm:$0xff]
  %v145 = vld [vmem:[%s143 + $0x8] sm:$0xff]
  %s146 = scalar_lea.vmem %s5, 2
  %v147 = vld [vmem:[%s146] sm:$0x1]
  %v149 = vperm.slane %v147, 0
  %151 = vrot.lane.b32.xlu0 %v56, 96
  %v152 = vpop.permute.xlu0 %151
  %v153 = vsel %vm67, %v152, 0
  %155 = vmatpush.msra.mxu0 0.0
  %156 = vmatpush.msra.mxu0 0.0
  %157 = vmatpush.msra.mxu0 0.0
  %158 = vmatpush.msra.mxu0 0.0
  %159 = vmatpush.msra.mxu0 0.0
  %160 = vmatpush.msra.mxu0 0.0
  %161 = vmatpush.msra.mxu0 0.0
  %162 = vmatpush.msra.mxu0 0.0
  %163 = vmatpush.msra.mxu0 0.0
  %164 = vmatpush.msra.mxu0 0.0
  %165 = vmatpush.msra.mxu0 0.0
  %166 = vmatpush.msra.mxu0 0.0
  %167 = vmatpush.msra.mxu0 0.0
  %168 = vmatpush.msra.mxu0 0.0
  %169 = vmatpush.msra.mxu0 %v145
  %170 = vmatpush.msra.mxu0 %v144
  %171 = vmatmul.f32.gmra.mxu0 %v153
  %v172 = vpop.f32.mrf.mxu0
  %v173 = vadd.f32 %v149, %v172
  %174 = vdwg.mxu0
  %176 = vset.pattern.permute.xlu0 0
  %177 = vperm.xlu0 %176, %v142
  %v178 = vpop.permute.xlu0 %177
  %v180 = vmul.f32 %v178, %v173
  %v181 = vadd.f32 %v139, %v180
  %vm182 = vcmask 15360
  %183 = vst.msk [vmem:[%s6] sm:$0xff] %vm182, %v181
  // Predicated region
  $region26: #{tpu_custom_call.1} parent=0 // pred_check
    _
  $region27: #{tpu_custom_call.1} parent=0 // pred_check_branch
    %185 = sbr.rel (0) target = $region29
  $region28: #{tpu_custom_call.1} parent=0 // pred_region
    _
  $region29: #{tpu_custom_call.1} parent=0 // pred_fallthru
    _
  // Predicated region
  $region30: #{tpu_custom_call.1} parent=0 // pred_check
    _
  $region31: #{tpu_custom_call.1} parent=0 // pred_check_branch
    %187 = sbr.rel (0) target = $region33
  $region32: #{tpu_custom_call.1} parent=0 // pred_region
    _
  $region33: #{tpu_custom_call.1} parent=0 // pred_fallthru
    _

</llo_original>
